<compile_context>
chip_gen: v6e
topology: v6e:2x2x1
jax: 0.10.0
libtpu: 0.0.40
codegen_flags: <defaults>
</compile_context>

<pallas_src>
import functools

import jax
import jax.numpy as jnp
from jax.experimental import pallas as pl
from jax.experimental.pallas import tpu as pltpu


def _round_up(x, m):
    return ((x + m - 1) // m) * m


def _mixture_to_dirichlet_kernel(pi_ref, x_ref, w1p_ref, w1x_ref, b1_ref,
                                 w2_ref, b2_ref, out_ref):
    # Layer 1 as a split dot over the concatenated [pi | X] input (no wrapper
    # concat pass): f32 tiles cast to bf16 in-register, f32 MXU accumulation.
    h = jnp.dot(pi_ref[...].astype(w1p_ref.dtype), w1p_ref[...],
                preferred_element_type=jnp.float32)
    h = h + jnp.dot(x_ref[...].astype(w1x_ref.dtype), w1x_ref[...],
                    preferred_element_type=jnp.float32)
    h = jnp.maximum(h + b1_ref[...], 0.0)                 # bias + ReLU (f32, VPU)
    # Layer 2: [TM, H] @ [H, CF_pad]  (bf16 operands, f32 accumulation)
    y = jnp.dot(h.astype(w2_ref.dtype), w2_ref[...],
                preferred_element_type=jnp.float32) + b2_ref[...]
    # Epilogue: softplus(y) + 0.001. When the output is bf16, run the
    # transcendentals in bf16 (EUP bf16 path on v6e/v7x) so the single EUP slot
    # doesn't become the ceiling once HBM traffic is halved.
    if out_ref.dtype == jnp.bfloat16:
        y = y.astype(jnp.bfloat16)
    out_ref[...] = (jax.nn.softplus(y) + 0.001).astype(out_ref.dtype)


def mixture_to_dirichlet_forward(pi, X, params, *, num_components, num_features,
                                 compute_dtype=jnp.bfloat16,
                                 out_dtype=jnp.float32, block_rows=4096):
    """pi: [n, C] f32, X: [n, F] f32 -> alpha: [n, C, F] (out_dtype)."""
    n, C = pi.shape
    n_x, F = X.shape
    assert C == num_components and F == num_features and n_x == n
    w1, b1, w2, b2 = params["w1"], params["b1"], params["w2"], params["b2"]
    hidden = w1.shape[1]
    CF = C * F
    CF_pad = _round_up(CF, 128)        # lane-dense output slab (no masked stores)

    # One-time weight prep (tiny): split W1 along the [pi | X] concat axis so
    # the kernel never needs a per-batch concat; pad W2/b2 columns only if
    # CF is not already lane-dense.
    w1p = w1[:C].astype(compute_dtype)          # [C, H]
    w1x = w1[C:].astype(compute_dtype)          # [F, H]
    w2c = w2.astype(compute_dtype)              # [H, CF]
    b1_2d = b1.reshape(1, hidden).astype(jnp.float32)
    b2_2d = b2.reshape(1, CF).astype(jnp.float32)
    if CF_pad != CF:
        w2c = jnp.pad(w2c, ((0, 0), (0, CF_pad - CF)))
        b2_2d = jnp.pad(b2_2d, ((0, 0), (0, CF_pad - CF)))

    # Batch tile: big (per-step overhead ~0.35 us) and a multiple of 16, but
    # keep >= 4 grid steps for large n so the "parallel" batch axis can feed
    # both TensorCores on v7x.  No batch padding: grid = cdiv(n, TM), Pallas
    # masks the partial last block and the output has exactly n rows.
    if n <= 16:
        TM = n                                   # single full-dim block
    else:
        TM = min(block_rows, _round_up(n, 16))
        while TM > 512 and pl.cdiv(n, TM) < 4:
            TM //= 2
    grid = (pl.cdiv(n, TM),)

    # VMEM budget: double-buffered streamed tiles (lane-padded) + resident
    # weights; raise the scoped limit explicitly so v5e's 16 MiB default never
    # shrinks the tile (cap well under v7x's 64 MiB physical VMEM).
    out_itemsize = jnp.dtype(out_dtype).itemsize
    est = 2 * (TM * 128 * 4                       # pi tile (lane-padded) f32
               + TM * _round_up(F, 128) * 4       # X tile f32
               + TM * CF_pad * out_itemsize)      # output tile
    est += 2 * (((C + F) * hidden + hidden * CF_pad) * 2
                + (hidden + CF_pad) * 4)          # resident weights/biases
    vmem_limit = int(min(48 << 20, max(32 << 20, est * 3 // 2)))

    out = pl.pallas_call(
        _mixture_to_dirichlet_kernel,
        out_shape=jax.ShapeDtypeStruct((n, CF_pad), out_dtype),
        grid=grid,
        in_specs=[
            pl.BlockSpec((TM, C), lambda i: (i, 0)),            # pi (streamed)
            pl.BlockSpec((TM, F), lambda i: (i, 0)),            # X  (streamed)
            pl.BlockSpec((C, hidden), lambda i: (0, 0)),        # W1[:C] (resident)
            pl.BlockSpec((F, hidden), lambda i: (0, 0)),        # W1[C:] (resident)
            pl.BlockSpec((1, hidden), lambda i: (0, 0)),        # b1     (resident)
            pl.BlockSpec((hidden, CF_pad), lambda i: (0, 0)),   # W2     (resident)
            pl.BlockSpec((1, CF_pad), lambda i: (0, 0)),        # b2     (resident)
        ],
        out_specs=pl.BlockSpec((TM, CF_pad), lambda i: (i, 0)),
        compiler_params=pltpu.CompilerParams(
            dimension_semantics=("parallel",),   # 2-TC sharding on v7x
            vmem_limit_bytes=vmem_limit),
    )(pi, X, w1p, w1x, b1_2d, w2c, b2_2d)

    if CF_pad != CF:
        out = out[:, :CF]
    return out.reshape(n, num_components, num_features)


def init_params(key, num_components, num_features, hidden_dim):
    """Deterministic init matching nn.Linear default (uniform +-1/sqrt(fan_in)).
    Weights stored as (in, out) so the kernel computes x @ W."""
    in1 = num_components + num_features
    in2 = hidden_dim
    out2 = num_components * num_features
    k1, k2, k3, k4 = jax.random.split(key, 4)
    lim1 = 1.0 / jnp.sqrt(in1)
    lim2 = 1.0 / jnp.sqrt(in2)
    return {
        "w1": jax.random.uniform(k1, (in1, hidden_dim), jnp.float32, -lim1, lim1),
        "b1": jax.random.uniform(k2, (hidden_dim,), jnp.float32, -lim1, lim1),
        "w2": jax.random.uniform(k3, (in2, out2), jnp.float32, -lim2, lim2),
        "b2": jax.random.uniform(k4, (out2,), jnp.float32, -lim2, lim2),
    }


def _reference_forward(pi, X, params, num_components, num_features,
                       compute_dtype=jnp.float32):
    """Plain-JAX reference; optionally mirrors the kernel's bf16 casts."""
    x = jnp.concatenate([pi, X], axis=1).astype(compute_dtype).astype(jnp.float32)
    w1 = params["w1"].astype(compute_dtype).astype(jnp.float32)
    w2 = params["w2"].astype(compute_dtype).astype(jnp.float32)
    h = jnp.maximum(x @ w1 + params["b1"], 0.0)
    h = h.astype(compute_dtype).astype(jnp.float32)
    y = h @ w2 + params["b2"]
    y = y.reshape(-1, num_components, num_features)
    return jax.nn.softplus(y) + 0.001


if __name__ == "__main__":
    num_components = 4      # C
    num_features = 32       # F  -> C*F = 128 (already lane-dense)
    hidden_dim = 128        # nn.Module default
    n = 8                   # batch

    key = jax.random.PRNGKey(0)
    kp, kx, kw, kp2, kx2 = jax.random.split(key, 5)

    # Mixture weights per sample (simplex) and observed expression.
    pi = jax.nn.softmax(jax.random.normal(kp, (n, num_components), jnp.float32), axis=1)
    X = jnp.abs(jax.random.normal(kx, (n, num_features), jnp.float32))

    params = init_params(kw, num_components, num_features, hidden_dim)

    fwd = functools.partial(mixture_to_dirichlet_forward,
                            num_components=num_components,
                            num_features=num_features)
    alpha = jax.block_until_ready(fwd(pi, X, params))
    assert alpha.shape == (n, num_components, num_features)

    # Tight check vs a reference that mirrors the kernel's bf16 casts.
    ref_bf16 = _reference_forward(pi, X, params, num_components, num_features,
                                  compute_dtype=jnp.bfloat16)
    assert jnp.allclose(alpha, ref_bf16, atol=1e-3, rtol=1e-3)

    # Loose sanity check vs the pure-f32 module semantics.
    ref_f32 = _reference_forward(pi, X, params, num_components, num_features,
                                 compute_dtype=jnp.float32)
    assert jnp.allclose(alpha, ref_f32, atol=5e-2, rtol=5e-2)

    # Multi-step grid + masked partial last block (no batch padding / slicing).
    n2 = 300
    pi2 = jax.nn.softmax(jax.random.normal(kp2, (n2, num_components), jnp.float32), axis=1)
    X2 = jnp.abs(jax.random.normal(kx2, (n2, num_features), jnp.float32))
    alpha2 = jax.block_until_ready(fwd(pi2, X2, params, block_rows=128))
    ref2 = _reference_forward(pi2, X2, params, num_components, num_features,
                              compute_dtype=jnp.bfloat16)
    assert alpha2.shape == (n2, num_components, num_features)
    assert jnp.allclose(alpha2, ref2, atol=2e-3, rtol=2e-3)

    # bf16-output path (halved output HBM traffic; loss-insensitive callers).
    alpha_bf16 = jax.block_until_ready(fwd(pi, X, params, out_dtype=jnp.bfloat16))
    assert alpha_bf16.dtype == jnp.bfloat16
    assert jnp.allclose(alpha_bf16.astype(jnp.float32), ref_bf16,
                        atol=5e-2, rtol=5e-2)

    # TODO(synk): dirichlet_multinomial_loss (lgamma-heavy static method) is not
    # part of forward(); left unimplemented.
    print("KERNEL_OK")
</pallas_src>

<mosaic_0001>
module attributes {stable_mosaic.version = 11 : i64} {
  func.func @_mixture_to_dirichlet_kernel(%arg0: i32, %arg1: memref<8x4xf32, #tpu.memory_space<vmem>>, %arg2: memref<8x32xf32, #tpu.memory_space<vmem>>, %arg3: memref<4x128xbf16, #tpu.memory_space<vmem>>, %arg4: memref<32x128xbf16, #tpu.memory_space<vmem>>, %arg5: memref<1x128xf32, #tpu.memory_space<vmem>>, %arg6: memref<128x128xbf16, #tpu.memory_space<vmem>>, %arg7: memref<1x128xf32, #tpu.memory_space<vmem>>, %arg8: memref<8x128xf32, #tpu.memory_space<vmem>>) attributes {dimension_semantics = [#tpu.dimension_semantics<parallel>], iteration_bounds = array<i64: 1>, scalar_prefetch = 0 : i64, scratch_operands = 0 : i64, tpu.core_type = #tpu.core_type<tc>, window_params = [{transform_indices = @transform_0, window_bounds = array<i64: 8, 4>}, {transform_indices = @transform_1, window_bounds = array<i64: 8, 32>}, {pipeline_mode = #tpu.pipeline_mode<synchronous>, transform_indices = @transform_2, window_bounds = array<i64: 4, 128>}, {pipeline_mode = #tpu.pipeline_mode<synchronous>, transform_indices = @transform_3, window_bounds = array<i64: 32, 128>}, {pipeline_mode = #tpu.pipeline_mode<synchronous>, transform_indices = @transform_4, window_bounds = array<i64: 1, 128>}, {pipeline_mode = #tpu.pipeline_mode<synchronous>, transform_indices = @transform_5, window_bounds = array<i64: 128, 128>}, {pipeline_mode = #tpu.pipeline_mode<synchronous>, transform_indices = @transform_6, window_bounds = array<i64: 1, 128>}, {transform_indices = @transform_7, window_bounds = array<i64: 8, 128>}]} {
    %c0 = arith.constant 0 : index
    %c0_0 = arith.constant 0 : index
    %0 = vector.load %arg1[%c0, %c0_0] : memref<8x4xf32, #tpu.memory_space<vmem>>, vector<8x4xf32>
    %1 = arith.truncf %0 : vector<8x4xf32> to vector<8x4xbf16>
    %c0_1 = arith.constant 0 : index
    %c0_2 = arith.constant 0 : index
    %2 = vector.load %arg3[%c0_1, %c0_2] : memref<4x128xbf16, #tpu.memory_space<vmem>>, vector<4x128xbf16>
    %cst = arith.constant dense<0.000000e+00> : vector<8x128xf32>
    %3 = tpu.matmul %1, %2, %cst {dimension_numbers = #tpu.dot_dimension_numbers<[1], [0], [0], [1], [0, 0, 1, 1], [], []>} : vector<8x4xbf16>, vector<4x128xbf16>, vector<8x128xf32> -> vector<8x128xf32>
    %c0_3 = arith.constant 0 : index
    %c0_4 = arith.constant 0 : index
    %4 = vector.load %arg2[%c0_3, %c0_4] : memref<8x32xf32, #tpu.memory_space<vmem>>, vector<8x32xf32>
    %5 = arith.truncf %4 : vector<8x32xf32> to vector<8x32xbf16>
    %c0_5 = arith.constant 0 : index
    %c0_6 = arith.constant 0 : index
    %6 = vector.load %arg4[%c0_5, %c0_6] : memref<32x128xbf16, #tpu.memory_space<vmem>>, vector<32x128xbf16>
    %cst_7 = arith.constant dense<0.000000e+00> : vector<8x128xf32>
    %7 = tpu.matmul %5, %6, %cst_7 {dimension_numbers = #tpu.dot_dimension_numbers<[1], [0], [0], [1], [0, 0, 1, 1], [], []>} : vector<8x32xbf16>, vector<32x128xbf16>, vector<8x128xf32> -> vector<8x128xf32>
    %8 = arith.addf %3, %7 : vector<8x128xf32>
    %c0_8 = arith.constant 0 : index
    %c0_9 = arith.constant 0 : index
    %9 = vector.load %arg5[%c0_8, %c0_9] : memref<1x128xf32, #tpu.memory_space<vmem>>, vector<1x128xf32>
    %10 = vector.broadcast %9 : vector<1x128xf32> to vector<8x128xf32>
    %11 = arith.addf %8, %10 : vector<8x128xf32>
    %cst_10 = arith.constant 0.000000e+00 : f32
    %12 = vector.broadcast %cst_10 : f32 to vector<8x128xf32>
    %13 = arith.maximumf %11, %12 : vector<8x128xf32>
    %14 = arith.truncf %13 : vector<8x128xf32> to vector<8x128xbf16>
    %c0_11 = arith.constant 0 : index
    %c0_12 = arith.constant 0 : index
    %15 = vector.load %arg6[%c0_11, %c0_12] : memref<128x128xbf16, #tpu.memory_space<vmem>>, vector<128x128xbf16>
    %cst_13 = arith.constant dense<0.000000e+00> : vector<8x128xf32>
    %16 = tpu.matmul %14, %15, %cst_13 {dimension_numbers = #tpu.dot_dimension_numbers<[1], [0], [0], [1], [0, 0, 1, 1], [], []>} : vector<8x128xbf16>, vector<128x128xbf16>, vector<8x128xf32> -> vector<8x128xf32>
    %c0_14 = arith.constant 0 : index
    %c0_15 = arith.constant 0 : index
    %17 = vector.load %arg7[%c0_14, %c0_15] : memref<1x128xf32, #tpu.memory_space<vmem>>, vector<1x128xf32>
    %18 = vector.broadcast %17 : vector<1x128xf32> to vector<8x128xf32>
    %19 = arith.addf %16, %18 : vector<8x128xf32>
    %cst_16 = arith.constant 0.000000e+00 : f32
    %20 = vector.broadcast %cst_16 : f32 to vector<8x128xf32>
    %21 = arith.maximumf %19, %20 : vector<8x128xf32>
    %22 = vector.broadcast %cst_16 : f32 to vector<8x128xf32>
    %23 = arith.subf %19, %22 : vector<8x128xf32>
    %24 = arith.cmpf one, %23, %23 : vector<8x128xf32>
    %25 = vector.broadcast %cst_16 : f32 to vector<8x128xf32>
    %26 = arith.addf %19, %25 : vector<8x128xf32>
    %27 = math.absf %23 : vector<8x128xf32>
    %cst_17 = arith.constant 0.000000e+00 : f32
    %28 = vector.broadcast %cst_17 : f32 to vector<8x128xf32>
    %29 = arith.subf %28, %27 : vector<8x128xf32>
    %30 = math.exp %29 : vector<8x128xf32>
    %31 = math.log1p %30 : vector<8x128xf32>
    %32 = arith.addf %21, %31 : vector<8x128xf32>
    %33 = arith.select %24, %26, %32 : vector<8x128xi1>, vector<8x128xf32>
    %cst_18 = arith.constant 1.000000e-03 : f32
    %34 = vector.broadcast %cst_18 : f32 to vector<8x128xf32>
    %35 = arith.addf %33, %34 : vector<8x128xf32>
    %c0_19 = arith.constant 0 : index
    %c0_20 = arith.constant 0 : index
    %36 = vector.load %arg8[%c0_19, %c0_20] : memref<8x128xf32, #tpu.memory_space<vmem>>, vector<8x128xf32>
    tpu.vector_store %arg8[%c0_19, %c0_20], %35 {strides = array<i32>} : memref<8x128xf32, #tpu.memory_space<vmem>>, vector<8x128xf32>,
    return
  }
  func.func @transform_0(%arg0: i32) -> (i32, i32) {
    %c0_i32 = arith.constant 0 : i32
    %c0_i32_0 = arith.constant 0 : i32
    return %arg0, %c0_i32 : i32, i32
  }
  func.func @transform_1(%arg0: i32) -> (i32, i32) {
    %c0_i32 = arith.constant 0 : i32
    %c0_i32_0 = arith.constant 0 : i32
    return %arg0, %c0_i32 : i32, i32
  }
  func.func @transform_2(%arg0: i32) -> (i32, i32) {
    %c0_i32 = arith.constant 0 : i32
    %c0_i32_0 = arith.constant 0 : i32
    %c0_i32_1 = arith.constant 0 : i32
    return %c0_i32, %c0_i32_0 : i32, i32
  }
  func.func @transform_3(%arg0: i32) -> (i32, i32) {
    %c0_i32 = arith.constant 0 : i32
    %c0_i32_0 = arith.constant 0 : i32
    %c0_i32_1 = arith.constant 0 : i32
    return %c0_i32, %c0_i32_0 : i32, i32
  }
  func.func @transform_4(%arg0: i32) -> (i32, i32) {
    %c0_i32 = arith.constant 0 : i32
    %c0_i32_0 = arith.constant 0 : i32
    %c0_i32_1 = arith.constant 0 : i32
    return %c0_i32, %c0_i32_0 : i32, i32
  }
  func.func @transform_5(%arg0: i32) -> (i32, i32) {
    %c0_i32 = arith.constant 0 : i32
    %c0_i32_0 = arith.constant 0 : i32
    %c0_i32_1 = arith.constant 0 : i32
    return %c0_i32, %c0_i32_0 : i32, i32
  }
  func.func @transform_6(%arg0: i32) -> (i32, i32) {
    %c0_i32 = arith.constant 0 : i32
    %c0_i32_0 = arith.constant 0 : i32
    %c0_i32_1 = arith.constant 0 : i32
    return %c0_i32, %c0_i32_0 : i32, i32
  }
  func.func @transform_7(%arg0: i32) -> (i32, i32) {
    %c0_i32 = arith.constant 0 : i32
    %c0_i32_0 = arith.constant 0 : i32
    return %arg0, %c0_i32 : i32, i32
  }
}

</mosaic_0001>

<llo_original>
// kernel: tpu_custom_call.1
$region0: #{tpu_custom_call.1}
  #allocation0 [shape = 'u32[]', space=smem, size = 0x4, offset = 0x4, fixed_abs, tag = 'smem constant byte address 0x4 - core index']
  #allocation1 [shape = 'u32[144,128]{1,0:T(1,128)}', space=vmem, size = 0x12000, scoped, tag = 'internal scratch']
  %s0 = inlined_call_operand.vmem [shape: f32[8,4], index: 0, kind: input, shape index: {}]
  %s1 = inlined_call_operand.hbm [shape: f32[8,32], index: 1, kind: input, shape index: {}]
  %s2 = inlined_call_operand.hbm [shape: bf16[4,128], index: 2, kind: input, shape index: {}]
  %s3 = inlined_call_operand.vmem [shape: bf16[32,128], index: 3, kind: input, shape index: {}]
  %s4 = inlined_call_operand.vmem [shape: f32[1,128], index: 4, kind: input, shape index: {}]
  %s5 = inlined_call_operand.hbm [shape: bf16[128,128], index: 5, kind: input, shape index: {}]
  %s6 = inlined_call_operand.vmem [shape: f32[1,128], index: 6, kind: input, shape index: {}]
  %s7 = inlined_call_operand.hbm [shape: f32[8,128], index: 7, kind: output, shape index: {}]
  %s8 = sld [smem:[#allocation0]]
  $region50: #{tpu_custom_call.1} parent=0
    _
  %s10 = ssub.s32 1, %s8
  %s11 = scalar_select 0, %s10, %s8
  $region1: #{tpu_custom_call.1} parent=0
    #allocation2 [shape = 'u8[4096]{0}', space=vmem, size = 0x1000, scoped, tag = 'input window, operand 1, single buffered']
    #allocation3 [shape = 's32[1]{0}', space=sflag, size = 0x4, scoped, tag = 'scoped memory for tpu_custom_call.1']
    #allocation4 [shape = 's32[1]{0}', space=sflag, size = 0x4, scoped, tag = 'scoped memory for tpu_custom_call.1']
    #allocation5 [shape = 'u8[1024]{0}', space=vmem, size = 0x400, scoped, tag = 'input window, operand 2, single buffered']
    #allocation6 [shape = 's32[1]{0}', space=sflag, size = 0x4, scoped, tag = 'scoped memory for tpu_custom_call.1']
    #allocation7 [shape = 'u8[32768]{0}', space=vmem, size = 0x8000, scoped, tag = 'input window, operand 5, single buffered']
    #allocation8 [shape = 'u8[4096]{0}', space=vmem, size = 0x1000, scoped, tag = 'output window, operand 0, single buffered']
    %12 = vsyncpa [#allocation3], 0
    %13 = vsyncpa [#allocation6], 0
    %14 = vsyncpa [#allocation4], 0
    // Predicated region
    $region2: #{tpu_custom_call.1} parent=1 // pred_check
      _
    $region3: #{tpu_custom_call.1} parent=1 // pred_check_branch
      %16 = sbr.rel (0) target = $region5
    $region4: #{tpu_custom_call.1} parent=1 // pred_region
      _
    $region5: #{tpu_custom_call.1} parent=1 // pred_fallthru
      _
    // Predicated region
    $region6: #{tpu_custom_call.1} parent=1 // pred_check
      _
    $region7: #{tpu_custom_call.1} parent=1 // pred_check_branch
      %18 = sbr.rel (0) target = $region9
    $region8: #{tpu_custom_call.1} parent=1 // pred_region
      %s20 = ssub.s32 128, 128
      %21 = vsyncadd [#allocation3], %s20
      %s23 = sshll.u32 [#allocation2], 4
      %s24 = int_to_ptr.vmem [resolvable:$true] %s23
      %26 = dma.hbm_to_vmem [thread:$0]  %s1, 128, %s24, [#allocation3]
    $region9: #{tpu_custom_call.1} parent=1 // pred_fallthru
      _
    // Predicated region
    $region10: #{tpu_custom_call.1} parent=1 // pred_check
      _
    $region11: #{tpu_custom_call.1} parent=1 // pred_check_branch
      %28 = sbr.rel (0) target = $region13
    $region12: #{tpu_custom_call.1} parent=1 // pred_region
      %s30 = ssub.s32 32, 32
      %31 = vsyncadd [#allocation6], %s30
      %s33 = sshll.u32 [#allocation5], 4
      %s34 = int_to_ptr.vmem [resolvable:$true] %s33
      %36 = dma.hbm_to_vmem [thread:$0]  %s2, 32, %s34, [#allocation6]
    $region13: #{tpu_custom_call.1} parent=1 // pred_fallthru
      _
    // Predicated region
    $region14: #{tpu_custom_call.1} parent=1 // pred_check
      _
    $region15: #{tpu_custom_call.1} parent=1 // pred_check_branch
      %38 = sbr.rel (0) target = $region17
    $region16: #{tpu_custom_call.1} parent=1 // pred_region
      _
    $region17: #{tpu_custom_call.1} parent=1 // pred_fallthru
      _
    // Predicated region
    $region18: #{tpu_custom_call.1} parent=1 // pred_check
      _
    $region19: #{tpu_custom_call.1} parent=1 // pred_check_branch
      %40 = sbr.rel (0) target = $region21
    $region20: #{tpu_custom_call.1} parent=1 // pred_region
      _
    $region21: #{tpu_custom_call.1} parent=1 // pred_fallthru
      _
    // Predicated region
    $region22: #{tpu_custom_call.1} parent=1 // pred_check
      _
    $region23: #{tpu_custom_call.1} parent=1 // pred_check_branch
      %42 = sbr.rel (0) target = $region25
    $region24: #{tpu_custom_call.1} parent=1 // pred_region
      %s44 = ssub.s32 1024, 1024
      %45 = vsyncadd [#allocation6], %s44
      %s46 = sshll.u32 [#allocation7], 4
      %s47 = int_to_ptr.vmem [resolvable:$true] %s46
      %52 = dma.hbm_to_vmem [thread:$0]  %s5, 1024, %s47, [#allocation6], 64, 64, 4
    $region25: #{tpu_custom_call.1} parent=1 // pred_fallthru
      _
    // Predicated region
    $region26: #{tpu_custom_call.1} parent=1 // pred_check
      _
    $region27: #{tpu_custom_call.1} parent=1 // pred_check_branch
      %54 = sbr.rel (0) target = $region29
    $region28: #{tpu_custom_call.1} parent=1 // pred_region
      _
    $region29: #{tpu_custom_call.1} parent=1 // pred_fallthru
      _
    // Predicated region
    $region30: #{tpu_custom_call.1} parent=1 // pred_check
      _
    $region31: #{tpu_custom_call.1} parent=1 // pred_check_branch
      %56 = sbr.rel (0) target = $region33
    $region32: #{tpu_custom_call.1} parent=1 // pred_region
      %57 = dma.done [#allocation3], 128
    $region33: #{tpu_custom_call.1} parent=1 // pred_fallthru
      _
    // Predicated region
    $region34: #{tpu_custom_call.1} parent=1 // pred_check
      _
    $region35: #{tpu_custom_call.1} parent=1 // pred_check_branch
      %59 = sbr.rel (0) target = $region37
    $region36: #{tpu_custom_call.1} parent=1 // pred_region
      %60 = dma.done [#allocation6], 32
    $region37: #{tpu_custom_call.1} parent=1 // pred_fallthru
      _
    // Predicated region
    $region38: #{tpu_custom_call.1} parent=1 // pred_check
      _
    $region39: #{tpu_custom_call.1} parent=1 // pred_check_branch
      %62 = sbr.rel (0) target = $region41
    $region40: #{tpu_custom_call.1} parent=1 // pred_region
      %63 = dma.done [#allocation6], 1024
    $region41: #{tpu_custom_call.1} parent=1 // pred_fallthru
      _
    %v65 = vld [vmem:[%s0] sm:$0xff]
    %v66 = vpack.c.bf16 %v65, %v65
    %v67 = vld [vmem:[#allocation5] sm:$0x3]
    %v68 = vld [vmem:[#allocation2] sm:$0xff]
    %v69 = vpack.c.bf16 %v68, %v68
    %v70 = vld [vmem:[%s3] sm:$0xf]
    %v71 = vld [vmem:[%s3 + $0x4] sm:$0xf]
    %v72 = vld [vmem:[%s3 + $0x8] sm:$0xf]
    %v73 = vld [vmem:[%s3 + $0xc] sm:$0xf]
    %v78 = vunpack.c.l.b16 %v70
    %v79 = vunpack.c.l.b16 %v71
    %v80 = vunpack.c.l.b16 %v72
    %v81 = vunpack.c.l.b16 %v73
    %v82 = vpack.c.b16 %v79, %v78
    %v83 = vpack.c.b16 %v81, %v80
    %vm86 = vcmask 261120
    %v88 = vsel %vm86, %v69, 0
    %90 = vmatprep.subr.bf16.mxu0 0
    %91 = vmatpush1.bf16.msra.mxu0 0
    %92 = vmatprep.subr.bf16.mxu0 0
    %93 = vmatpush1.bf16.msra.mxu0 0
    %94 = vmatprep.subr.bf16.mxu0 0
    %95 = vmatpush1.bf16.msra.mxu0 0
    %96 = vmatprep.subr.bf16.mxu0 0
    %97 = vmatpush1.bf16.msra.mxu0 0
    %98 = vmatprep.subr.bf16.mxu0 0
    %99 = vmatpush1.bf16.msra.mxu0 0
    %100 = vmatprep.subr.bf16.mxu0 0
    %101 = vmatpush1.bf16.msra.mxu0 0
    %102 = vmatprep.subr.bf16.mxu0 0
    %103 = vmatpush1.bf16.msra.mxu0 %v83
    %104 = vmatprep.subr.bf16.mxu0 0
    %105 = vmatpush1.bf16.msra.mxu0 %v82
    %106 = vmatprep.subr.bf16.mxu0 0
    %107 = vmatpush2.bf16.msra.mxu0 0
    %108 = vmatprep.subr.bf16.mxu0 0
    %109 = vmatpush2.bf16.msra.mxu0 0
    %110 = vmatprep.subr.bf16.mxu0 0
    %111 = vmatpush2.bf16.msra.mxu0 0
    %112 = vmatprep.subr.bf16.mxu0 0
    %113 = vmatpush2.bf16.msra.mxu0 0
    %114 = vmatprep.subr.bf16.mxu0 0
    %115 = vmatpush2.bf16.msra.mxu0 0
    %116 = vmatprep.subr.bf16.mxu0 0
    %117 = vmatpush2.bf16.msra.mxu0 0
    %118 = vmatprep.subr.bf16.mxu0 0
    %119 = vmatpush2.bf16.msra.mxu0 0
    %120 = vmatprep.subr.bf16.mxu0 0
    %121 = vmatpush2.bf16.msra.mxu0 0
    %122 = vmatprep.mubr.bf16.mxu0 0
    %123 = vmatmul.mubr.bf16.gmra.mxu0 %v88
    %v124 = vpop.f32.mrf.mxu0
    %v125 = vadd.f32 0.0, %v124
    %v126 = vpop.f32.mrf.mxu0
    %v127 = vpop.f32.mrf.mxu0
    %v128 = vpop.f32.mrf.mxu0
    %129 = vdwg.mxu0
    %vm130 = vcmask 31744
    %v132 = vsel %vm130, %v66, 0
    %vm134 = vcmask 1041408
    %v136 = vsel %vm134, %v67, 0
    %138 = vmatprep.subr.bf16.mxu0 0
    %139 = vmatpush1.bf16.msra.mxu0 0
    %140 = vmatprep.subr.bf16.mxu0 0
    %141 = vmatpush1.bf16.msra.mxu0 0
    %142 = vmatprep.subr.bf16.mxu0 0
    %143 = vmatpush1.bf16.msra.mxu0 0
    %144 = vmatprep.subr.bf16.mxu0 0
    %145 = vmatpush1.bf16.msra.mxu0 0
    %146 = vmatprep.subr.bf16.mxu0 0
    %147 = vmatpush1.bf16.msra.mxu0 0
    %148 = vmatprep.subr.bf16.mxu0 0
    %149 = vmatpush1.bf16.msra.mxu0 0
    %150 = vmatprep.subr.bf16.mxu0 0
    %151 = vmatpush1.bf16.msra.mxu0 0
    %152 = vmatprep.subr.bf16.mxu0 0
    %153 = vmatpush1.bf16.msra.mxu0 %v136
    %154 = vmatprep.subr.bf16.mxu0 0
    %155 = vmatpush2.bf16.msra.mxu0 0
    %156 = vmatprep.subr.bf16.mxu0 0
    %157 = vmatpush2.bf16.msra.mxu0 0
    %158 = vmatprep.subr.bf16.mxu0 0
    %159 = vmatpush2.bf16.msra.mxu0 0
    %160 = vmatprep.subr.bf16.mxu0 0
    %161 = vmatpush2.bf16.msra.mxu0 0
    %162 = vmatprep.subr.bf16.mxu0 0
    %163 = vmatpush2.bf16.msra.mxu0 0
    %164 = vmatprep.subr.bf16.mxu0 0
    %165 = vmatpush2.bf16.msra.mxu0 0
    %166 = vmatprep.subr.bf16.mxu0 0
    %167 = vmatpush2.bf16.msra.mxu0 0
    %168 = vmatprep.subr.bf16.mxu0 0
    %169 = vmatpush2.bf16.msra.mxu0 0
    %170 = vmatprep.mubr.bf16.mxu0 0
    %171 = vmatmul.mubr.bf16.gmra.mxu0 %v132
    %v172 = vpop.f32.mrf.mxu0
    %v173 = vadd.f32 %v125, %v172
    %v174 = vpop.f32.mrf.mxu0
    %v175 = vpop.f32.mrf.mxu0
    %v176 = vpop.f32.mrf.mxu0
    %177 = vdwg.mxu0
    %v178 = vld [vmem:[%s4] sm:$0x1]
    %v180 = vlaneseq
    %v181 = vshrl.u32 %v180, 7
    %v182 = vsub.s32 0, %v181
    %v183 = vrot.slane %v178, %v182
    %v185 = vadd.f32 %v173, %v183
    %v186 = vmax.f32 %v185, 0.0
    %v187 = vpack.c.bf16 %v186, %v186
    %v188 = vld [vmem:[#allocation7] sm:$0xf]
    %v189 = vld [vmem:[#allocation7 + $0x4] sm:$0xf]
    %v190 = vld [vmem:[#allocation7 + $0x8] sm:$0xf]
    %v191 = vld [vmem:[#allocation7 + $0xc] sm:$0xf]
    %v192 = vld [vmem:[#allocation7 + $0x10] sm:$0xf]
    %v193 = vld [vmem:[#allocation7 + $0x14] sm:$0xf]
    %v194 = vld [vmem:[#allocation7 + $0x18] sm:$0xf]
    %v195 = vld [vmem:[#allocation7 + $0x1c] sm:$0xf]
    %v196 = vld [vmem:[#allocation7 + $0x20] sm:$0xf]
    %v197 = vld [vmem:[#allocation7 + $0x24] sm:$0xf]
    %v198 = vld [vmem:[#allocation7 + $0x28] sm:$0xf]
    %v199 = vld [vmem:[#allocation7 + $0x2c] sm:$0xf]
    %v200 = vld [vmem:[#allocation7 + $0x30] sm:$0xf]
    %v201 = vld [vmem:[#allocation7 + $0x34] sm:$0xf]
    %v202 = vld [vmem:[#allocation7 + $0x38] sm:$0xf]
    %v203 = vld [vmem:[#allocation7 + $0x3c] sm:$0xf]
    %v204 = vld [vmem:[%s6] sm:$0x1]
    %v206 = vlaneseq
    %v207 = vshrl.u32 %v206, 7
    %v208 = vsub.s32 0, %v207
    %v209 = vrot.slane %v204, %v208
    %v227 = vunpack.c.l.b16 %v188
    %v228 = vunpack.c.l.b16 %v189
    %v229 = vunpack.c.l.b16 %v190
    %v230 = vunpack.c.l.b16 %v191
    %v231 = vunpack.c.l.b16 %v192
    %v232 = vunpack.c.l.b16 %v193
    %v233 = vunpack.c.l.b16 %v194
    %v234 = vunpack.c.l.b16 %v195
    %v235 = vunpack.c.l.b16 %v196
    %v236 = vunpack.c.l.b16 %v197
    %v237 = vunpack.c.l.b16 %v198
    %v238 = vunpack.c.l.b16 %v199
    %v239 = vunpack.c.l.b16 %v200
    %v240 = vunpack.c.l.b16 %v201
    %v241 = vunpack.c.l.b16 %v202
    %v242 = vunpack.c.l.b16 %v203
    %v243 = vpack.c.b16 %v228, %v227
    %v244 = vpack.c.b16 %v230, %v229
    %v245 = vpack.c.b16 %v232, %v231
    %v246 = vpack.c.b16 %v234, %v233
    %v247 = vpack.c.b16 %v236, %v235
    %v248 = vpack.c.b16 %v238, %v237
    %v249 = vpack.c.b16 %v240, %v239
    %v250 = vpack.c.b16 %v242, %v241
    %259 = vmatprep.subr.bf16.mxu0 0
    %260 = vmatpush1.bf16.msra.mxu0 %v250
    %261 = vmatprep.subr.bf16.mxu0 0
    %262 = vmatpush1.bf16.msra.mxu0 %v249
    %263 = vmatprep.subr.bf16.mxu0 0
    %264 = vmatpush1.bf16.msra.mxu0 %v248
    %265 = vmatprep.subr.bf16.mxu0 0
    %266 = vmatpush1.bf16.msra.mxu0 %v247
    %267 = vmatprep.subr.bf16.mxu0 0
    %268 = vmatpush1.bf16.msra.mxu0 %v246
    %269 = vmatprep.subr.bf16.mxu0 0
    %270 = vmatpush1.bf16.msra.mxu0 %v245
    %271 = vmatprep.subr.bf16.mxu0 0
    %272 = vmatpush1.bf16.msra.mxu0 %v244
    %273 = vmatprep.subr.bf16.mxu0 0
    %274 = vmatpush1.bf16.msra.mxu0 %v243
    %275 = vmatprep.subr.bf16.mxu0 0
    %276 = vmatpush2.bf16.msra.mxu0 0
    %277 = vmatprep.subr.bf16.mxu0 0
    %278 = vmatpush2.bf16.msra.mxu0 0
    %279 = vmatprep.subr.bf16.mxu0 0
    %280 = vmatpush2.bf16.msra.mxu0 0
    %281 = vmatprep.subr.bf16.mxu0 0
    %282 = vmatpush2.bf16.msra.mxu0 0
    %283 = vmatprep.subr.bf16.mxu0 0
    %284 = vmatpush2.bf16.msra.mxu0 0
    %285 = vmatprep.subr.bf16.mxu0 0
    %286 = vmatpush2.bf16.msra.mxu0 0
    %287 = vmatprep.subr.bf16.mxu0 0
    %288 = vmatpush2.bf16.msra.mxu0 0
    %289 = vmatprep.subr.bf16.mxu0 0
    %290 = vmatpush2.bf16.msra.mxu0 0
    %291 = vmatprep.mubr.bf16.mxu0 0
    %292 = vmatmul.mubr.bf16.gmra.mxu0 %v187
    %v293 = vpop.f32.mrf.mxu0
    %v294 = vadd.f32 %v209, %v293
    %v295 = vpop.f32.mrf.mxu0
    %v296 = vpop.f32.mrf.mxu0
    %v297 = vpop.f32.mrf.mxu0
    %298 = vdwg.mxu0
    %v299 = vmax.f32 %v294, 0.0
    %vm300 = vcmp.ne.f32.partialorder %v294, %v294
    %v301 = vadd.f32 %v294, 0.0
    %v302 = vand.u32 2147483647, %v294
    %v303 = vsub.f32 0.0, %v302
    %v304 = vmul.f32 %v303, 1.442695
    %v305 = vpow.pop %v304
    %v306 = vadd.f32 %v305, 1.0
    %v307 = vlog2.pop %v306
    %v308 = vmul.f32 %v307, 0.6931472
    %v309 = vmul.f32 -0.5, %v305
    %v310 = vadd.f32 %v309, 1.0
    %v311 = vmul.f32 %v310, %v305
    %v312 = vand.u32 2147483647, %v305
    %vm313 = vcmp.lt.f32.partialorder %v312, 0.0004427343
    %v314 = vsel %vm313, %v311, %v308
    %v315 = vadd.f32 %v299, %v314
    %v316 = vsel %vm300, %v301, %v315
    %v317 = vadd.f32 %v316, 0.001
    %318 = vst [vmem:[#allocation8] sm:$0xff] %v317
    // Predicated region
    $region42: #{tpu_custom_call.1} parent=1 // pred_check
      _
    $region43: #{tpu_custom_call.1} parent=1 // pred_check_branch
      %320 = sbr.rel (0) target = $region45
    $region44: #{tpu_custom_call.1} parent=1 // pred_region
      %s322 = ssub.s32 128, 128
      %323 = vsyncadd [#allocation4], %s322
      %s325 = sshll.u32 [#allocation8], 4
      %s326 = int_to_ptr.vmem [resolvable:$true] %s325
      %328 = dma.vmem_to_hbm [thread:$0]  %s326, 128, %s7, [#allocation4]
    $region45: #{tpu_custom_call.1} parent=1 // pred_fallthru
      _
    // Predicated region
    $region46: #{tpu_custom_call.1} parent=1 // pred_check
      _
    $region47: #{tpu_custom_call.1} parent=1 // pred_check_branch
      %330 = sbr.rel (0) target = $region49
    $region48: #{tpu_custom_call.1} parent=1 // pred_region
      %331 = dma.done [#allocation4], 128
    $region49: #{tpu_custom_call.1} parent=1 // pred_fallthru
      _
    %332 = vsyncpa [#allocation3], 1
    %333 = vsyncpa [#allocation6], 1
    %334 = vsyncpa [#allocation4], 1

</llo_original>
